<compile_context>
chip_gen: v7x
topology: tpu7x:2x2x1
jax: 0.10.0
libtpu: 0.0.40
codegen_flags: <defaults>
</compile_context>

<pallas_src>
import functools

import jax
import jax.numpy as jnp
from jax.experimental import pallas as pl
from jax.experimental.pallas import tpu as pltpu


def _deepset_kernel(x_ref, wd_ref, w2_ref, b_ref, o_ref):
    # x_ref : [G_BLK, k, C_in, P_BLK]   (channels on sublanes, pixels on lanes)
    # wd_ref: [C_out, C_in]             (W1 - W2)
    # w2_ref: [C_out, C_in]
    # b_ref : [C_out, 1]                (b1 + b2)
    # o_ref : [G_BLK, k, C_out, P_BLK]
    x = x_ref[...]
    g_blk, k, c_in, p_blk = x.shape
    c_out = wd_ref.shape[0]

    # Per-group set sum over k (f32 accumulation), k times smaller than x.
    x_sum = jnp.sum(x.astype(jnp.float32), axis=1)               # [G, C_in, P]

    # Main term: (W1 - W2) applied to every set element.
    # Batched 2D matmuls: lhs [B, C_out, C_in] x rhs [B, C_in, P] -> [B, C_out, P]
    x3 = x.reshape(g_blk * k, c_in, p_blk)
    wd_b = jnp.broadcast_to(wd_ref[...], (g_blk * k, c_out, c_in))
    main = jax.lax.dot_general(
        wd_b, x3,
        dimension_numbers=(((2,), (1,)), ((0,), (0,))),
        preferred_element_type=jnp.float32,
    ).reshape(g_blk, k, c_out, p_blk)

    # Aggregate term: W2 applied to the per-group sum (k-times fewer rows).
    w2_b = jnp.broadcast_to(w2_ref[...], (g_blk, c_out, c_in))
    agg = jax.lax.dot_general(
        w2_b, x_sum,
        dimension_numbers=(((2,), (1,)), ((0,), (0,))),
        preferred_element_type=jnp.float32,
    )                                                            # [G, C_out, P]

    out = main + agg[:, None, :, :] + b_ref[...]                 # bias lane-broadcast
    o_ref[...] = out.astype(o_ref.dtype)


@functools.partial(jax.jit, static_argnames=("k",))
def deepset_layer_conv(x_nchw, w1, b1, w2, b2, *, k):
    """DeepSetLayer forward (conv type, 1x1 convs).

    x_nchw : [B, C_in, H, W] with B divisible by k.
    w1, w2 : [C_out, C_in]   (1x1 conv weights, PyTorch layout squeezed)
    b1, b2 : [C_out]
    returns: [B, C_out, H, W]
    """
    B, C_in, H, W = x_nchw.shape
    assert B % k == 0
    g = B // k
    P = H * W
    C_out = w1.shape[0]

    # Pure reshape (no transpose): channels stay on sublanes, pixels on lanes.
    x = x_nchw.reshape(g, k, C_in, P)

    # Algebraic fold of the two 1x1 convs.
    w_diff = w1 - w2                       # [C_out, C_in]
    b_sum = (b1 + b2).reshape(C_out, 1)    # [C_out, 1]

    itemsize = x.dtype.itemsize

    # ---- pixel-axis tile (only split when large and 128-divisible) ----------
    if P % 128 == 0 and P > 4096:
        p_blk = 2048
        while P % p_blk != 0:
            p_blk //= 2                    # terminates: P % 128 == 0
        p_blk = max(p_blk, 128)
    else:
        p_blk = P

    # ---- group-axis blocking: target a few-MiB input block, keep >=2 steps --
    per_group_in = k * C_in * p_blk * itemsize
    target_block_bytes = 4 * 1024 * 1024
    cand = max(1, target_block_bytes // max(per_group_in, 1))
    if g >= 2:
        cand = min(cand, g // 2)           # leave >=2 grid steps (v7x megacore)
        cand = max(cand, 1)
    g_blk = 1
    for d in range(1, g + 1):
        if g % d == 0 and d <= cand:
            g_blk = d

    grid = (g // g_blk, P // p_blk)
    in_block = (g_blk, k, C_in, p_blk)
    out_block = (g_blk, k, C_out, p_blk)

    # Double-buffered in+out blocks + weights + headroom; floor at 32 MiB
    # (raises v5e's 16 MiB scoped default), cap well under v7x's 64 MiB VMEM.
    vmem_needed = 2 * (g_blk * k * (C_in + C_out) * p_blk * itemsize) \
        + 3 * C_out * C_in * 4 + (4 << 20)
    vmem_limit = int(min(56 << 20, max(32 << 20, vmem_needed)))

    out = pl.pallas_call(
        _deepset_kernel,
        out_shape=jax.ShapeDtypeStruct((g, k, C_out, P), x.dtype),
        grid_spec=pltpu.PrefetchScalarGridSpec(
            num_scalar_prefetch=0,
            grid=grid,
            in_specs=[
                pl.BlockSpec(in_block, lambda i, j: (i, 0, 0, j)),
                pl.BlockSpec((C_out, C_in), lambda i, j: (0, 0)),
                pl.BlockSpec((C_out, C_in), lambda i, j: (0, 0)),
                pl.BlockSpec((C_out, 1), lambda i, j: (0, 0)),
            ],
            out_specs=pl.BlockSpec(out_block, lambda i, j: (i, 0, 0, j)),
        ),
        compiler_params=pltpu.CompilerParams(
            dimension_semantics=("parallel", "parallel"),
            vmem_limit_bytes=vmem_limit,
        ),
    )(x, w_diff, w2, b_sum)

    # [g, k, C_out, H*W] -> NCHW, pure reshape (no transpose).
    return out.reshape(B, C_out, H, W)


def _reference(x_nchw, w1, b1, w2, b2, k):
    """Pure-JAX reference mirroring the PyTorch forward with 1x1 convs."""
    B, C, H, W = x_nchw.shape
    x_siam = jnp.einsum("bchw,oc->bohw", x_nchw, w1) + b1[None, :, None, None]
    xr = x_nchw.reshape(-1, k, C, H, W)
    x_sum = jnp.sum(xr, axis=1, keepdims=True)
    x_agg = (x_sum - xr).reshape(B, C, H, W)
    x_agg = jnp.einsum("bchw,oc->bohw", x_agg, w2) + b2[None, :, None, None]
    return x_siam + x_agg


if __name__ == "__main__":
    key = jax.random.PRNGKey(0)
    k_set = 4            # set size k
    g = 2                # number of sets
    B = g * k_set        # PyTorch batch dim
    C_in, C_out = 8, 8
    H = W = 16

    kx, kw1, kb1, kw2, kb2 = jax.random.split(key, 5)
    x = jax.random.normal(kx, (B, C_in, H, W), dtype=jnp.float32)
    w1 = jax.random.normal(kw1, (C_out, C_in), dtype=jnp.float32) * 0.1
    b1 = jax.random.normal(kb1, (C_out,), dtype=jnp.float32) * 0.1
    w2 = jax.random.normal(kw2, (C_out, C_in), dtype=jnp.float32) * 0.1
    b2 = jax.random.normal(kb2, (C_out,), dtype=jnp.float32) * 0.1

    out = deepset_layer_conv(x, w1, b1, w2, b2, k=k_set)
    out = jax.block_until_ready(out)

    ref = _reference(x, w1, b1, w2, b2, k_set)
    assert out.shape == (B, C_out, H, W)
    assert jnp.allclose(out, ref, atol=1e-4, rtol=1e-4), "mismatch vs reference"

    print("KERNEL_OK")
</pallas_src>

<mosaic_0001>
module attributes {stable_mosaic.version = 11 : i64} {
  func.func @_deepset_kernel(%arg0: i32, %arg1: i32, %arg2: memref<1x4x8x256xf32, #tpu.memory_space<vmem>>, %arg3: memref<8x8xf32, #tpu.memory_space<vmem>>, %arg4: memref<8x8xf32, #tpu.memory_space<vmem>>, %arg5: memref<8x1xf32, #tpu.memory_space<vmem>>, %arg6: memref<1x4x8x256xf32, #tpu.memory_space<vmem>>) attributes {dimension_semantics = [#tpu.dimension_semantics<parallel>, #tpu.dimension_semantics<parallel>], iteration_bounds = array<i64: 2, 1>, scalar_prefetch = 0 : i64, scratch_operands = 0 : i64, tpu.core_type = #tpu.core_type<tc>, window_params = [{transform_indices = @transform_0, window_bounds = array<i64: 1, 4, 8, 256>}, {pipeline_mode = #tpu.pipeline_mode<synchronous>, transform_indices = @transform_1, window_bounds = array<i64: 8, 8>}, {pipeline_mode = #tpu.pipeline_mode<synchronous>, transform_indices = @transform_2, window_bounds = array<i64: 8, 8>}, {pipeline_mode = #tpu.pipeline_mode<synchronous>, transform_indices = @transform_3, window_bounds = array<i64: 8, 1>}, {transform_indices = @transform_4, window_bounds = array<i64: 1, 4, 8, 256>}]} {
    %c0 = arith.constant 0 : index
    %c0_0 = arith.constant 0 : index
    %c0_1 = arith.constant 0 : index
    %c0_2 = arith.constant 0 : index
    %0 = vector.load %arg2[%c0, %c0_0, %c0_1, %c0_2] : memref<1x4x8x256xf32, #tpu.memory_space<vmem>>, vector<1x4x8x256xf32>
    %cst = arith.constant dense<0.000000e+00> : vector<1x8x256xf32>
    %1 = vector.multi_reduction <add>, %0, %cst [1] : vector<1x4x8x256xf32> to vector<1x8x256xf32>
    %2 = vector.shape_cast %0 : vector<1x4x8x256xf32> to vector<4x8x256xf32>
    %c0_3 = arith.constant 0 : index
    %c0_4 = arith.constant 0 : index
    %3 = vector.load %arg3[%c0_3, %c0_4] : memref<8x8xf32, #tpu.memory_space<vmem>>, vector<8x8xf32>
    %4 = vector.shape_cast %3 : vector<8x8xf32> to vector<1x8x8xf32>
    %5 = vector.broadcast %4 : vector<1x8x8xf32> to vector<4x8x8xf32>
    %cst_5 = arith.constant dense<0.000000e+00> : vector<4x8x256xf32>
    %6 = tpu.matmul %5, %2, %cst_5 {dimension_numbers = #tpu.dot_dimension_numbers<[2], [1], [1], [2], [0, 0, 0, 1, 1, 2], [0], [0]>} : vector<4x8x8xf32>, vector<4x8x256xf32>, vector<4x8x256xf32> -> vector<4x8x256xf32>
    %7 = vector.shape_cast %6 : vector<4x8x256xf32> to vector<1x4x8x256xf32>
    %c0_6 = arith.constant 0 : index
    %c0_7 = arith.constant 0 : index
    %8 = vector.load %arg4[%c0_6, %c0_7] : memref<8x8xf32, #tpu.memory_space<vmem>>, vector<8x8xf32>
    %9 = vector.shape_cast %8 : vector<8x8xf32> to vector<1x8x8xf32>
    %cst_8 = arith.constant dense<0.000000e+00> : vector<1x8x256xf32>
    %10 = tpu.matmul %9, %1, %cst_8 {dimension_numbers = #tpu.dot_dimension_numbers<[2], [1], [1], [2], [0, 0, 0, 1, 1, 2], [0], [0]>} : vector<1x8x8xf32>, vector<1x8x256xf32>, vector<1x8x256xf32> -> vector<1x8x256xf32>
    %11 = vector.shape_cast %10 : vector<1x8x256xf32> to vector<1x1x8x256xf32>
    %12 = vector.broadcast %11 : vector<1x1x8x256xf32> to vector<1x4x8x256xf32>
    %13 = arith.addf %7, %12 : vector<1x4x8x256xf32>
    %c0_9 = arith.constant 0 : index
    %c0_10 = arith.constant 0 : index
    %14 = vector.load %arg5[%c0_9, %c0_10] : memref<8x1xf32, #tpu.memory_space<vmem>>, vector<8x1xf32>
    %15 = vector.shape_cast %14 : vector<8x1xf32> to vector<1x1x8x1xf32>
    %16 = vector.broadcast %15 : vector<1x1x8x1xf32> to vector<1x4x8x256xf32>
    %17 = arith.addf %13, %16 : vector<1x4x8x256xf32>
    %c0_11 = arith.constant 0 : index
    %c0_12 = arith.constant 0 : index
    %c0_13 = arith.constant 0 : index
    %c0_14 = arith.constant 0 : index
    %18 = vector.load %arg6[%c0_11, %c0_12, %c0_13, %c0_14] : memref<1x4x8x256xf32, #tpu.memory_space<vmem>>, vector<1x4x8x256xf32>
    tpu.vector_store %arg6[%c0_11, %c0_12, %c0_13, %c0_14], %17 {strides = array<i32>} : memref<1x4x8x256xf32, #tpu.memory_space<vmem>>, vector<1x4x8x256xf32>,
    return
  }
  func.func @transform_0(%arg0: i32, %arg1: i32) -> (i32, i32, i32, i32) {
    %c0_i32 = arith.constant 0 : i32
    %c0_i32_0 = arith.constant 0 : i32
    %c0_i32_1 = arith.constant 0 : i32
    return %arg0, %c0_i32, %c0_i32_0, %arg1 : i32, i32, i32, i32
  }
  func.func @transform_1(%arg0: i32, %arg1: i32) -> (i32, i32) {
    %c0_i32 = arith.constant 0 : i32
    %c0_i32_0 = arith.constant 0 : i32
    %c0_i32_1 = arith.constant 0 : i32
    return %c0_i32, %c0_i32_0 : i32, i32
  }
  func.func @transform_2(%arg0: i32, %arg1: i32) -> (i32, i32) {
    %c0_i32 = arith.constant 0 : i32
    %c0_i32_0 = arith.constant 0 : i32
    %c0_i32_1 = arith.constant 0 : i32
    return %c0_i32, %c0_i32_0 : i32, i32
  }
  func.func @transform_3(%arg0: i32, %arg1: i32) -> (i32, i32) {
    %c0_i32 = arith.constant 0 : i32
    %c0_i32_0 = arith.constant 0 : i32
    %c0_i32_1 = arith.constant 0 : i32
    return %c0_i32, %c0_i32_0 : i32, i32
  }
  func.func @transform_4(%arg0: i32, %arg1: i32) -> (i32, i32, i32, i32) {
    %c0_i32 = arith.constant 0 : i32
    %c0_i32_0 = arith.constant 0 : i32
    %c0_i32_1 = arith.constant 0 : i32
    return %arg0, %c0_i32, %c0_i32_0, %arg1 : i32, i32, i32, i32
  }
}

</mosaic_0001>

<llo_original>
// kernel: sub.1
$region0: #{sub.1}
  #allocation0 [shape = 's32[1]{0}', space=sflag, size = 0x4, scoped, tag = 'scoped memory for sub.1']
  %s0 = inlined_call_operand.vmem [shape: f32[8,8], index: 0, kind: input, shape index: {}]
  %s1 = inlined_call_operand.vmem [shape: f32[8,8], index: 1, kind: input, shape index: {}]
  %s2 = inlined_call_operand.vmem [shape: f32[8,8], index: 2, kind: output, shape index: {}]
  %v3 = vld [vmem:[%s0] sm:$0xff]
  %v4 = vld [vmem:[%s1] sm:$0xff]
  %5 = xla_tuple %v3, %v4
  %6 = xla_tuple %5
  %v7 = vsub.f32 %v3, %v4
  %8 = xla_tuple %v7
  %9 = vst [vmem:[%s2] sm:$0xff] %v7

// kernel: deepset_layer_conv.1
$region0: #{deepset_layer_conv.1}
  #allocation0 [shape = 'u32[]', space=smem, size = 0x4, offset = 0x4, fixed_abs, tag = 'smem constant byte address 0x4 - core index']
  #allocation1 [shape = 'u32[144,128]{1,0:T(1,128)}', space=vmem, size = 0x12000, scoped, tag = 'internal scratch']
  %s0 = inlined_call_operand.vmem [shape: f32[2,4,8,256], index: 0, kind: input, shape index: {}]
  %s1 = inlined_call_operand.vmem [shape: f32[8,8], index: 1, kind: input, shape index: {}]
  %s2 = inlined_call_operand.vmem [shape: f32[8,8], index: 2, kind: input, shape index: {}]
  %s3 = inlined_call_operand.vmem [shape: f32[8,1], index: 3, kind: input, shape index: {}]
  %s4 = inlined_call_operand.vmem [shape: f32[2,4,8,256], index: 4, kind: output, shape index: {}]
  %s5 = sld [smem:[#allocation0]]
  $region49: #{deepset_layer_conv.1} parent=0
    _
  %s7 = ssub.s32 1, %s5
  %s8 = scalar_select 0, %s7, %s5
  loop: start=0, step=1, limit=4
  $region2: #{deepset_layer_conv.1} parent=0 // loop_pre_header
    _
  $region3: #{deepset_layer_conv.1} parent=0 // loop_header
    %s10 = sphi 0, %s14
    %p11 = scmp.ge.s32.totalorder %s10, 4
    %s17 = sphi 0, %s29
    %s18 = sphi 0, %s25
    %s19 = sphi 0, %s17
    %s20 = sphi 0, %s18
    %s21 = sphi 0, %s19
    %s22 = sphi 0, %s20
    %s34 = sphi 0, %s36
    %s37 = sphi 0, %s34
    %s38 = sphi 0, %s37
    %s54 = sphi 0, %s38
    %s58 = sphi 0, %s58
    %s60 = sphi 0, %s58
    %s61 = sphi 0, %s60
    %s75 = sphi 0, %s61
    %s79 = sphi 0, %s79
    %s81 = sphi 0, %s79
    %s82 = sphi 0, %s81
    %s96 = sphi 0, %s82
    %s100 = sphi 0, %s100
    %s102 = sphi 0, %s100
    %s103 = sphi 0, %s102
    %s117 = sphi 0, %s103
    %s125 = sphi 0, %s127
    %s128 = sphi 0, %s125
    %s129 = sphi 0, %s128
    %s145 = sphi 0, %s129
  $region4: #{deepset_layer_conv.1} parent=0 // loop_header_branch
    %13 = sbr.rel (%p11) target = $region8
  $region5: #{deepset_layer_conv.1} parent=0 // loop_body
    %s15 = ssub.s32 %s10, 1
    %s16 = ssub.s32 %s10, 2
    %s23 = sadd.s32 1, %s18
    %p24 = scmp.ge.s32.totalorder %s23, 1
    %s25 = scalar_select %p24, 0, %s23
    %s26 = sadd.s32 1, %s17
    %s27 = scalar_select %p24, %s26, %s17
    %p28 = scmp.ge.s32.totalorder %s27, 2
    %s29 = scalar_select %p28, 0, %s27
    %s30 = ssub.s32 %s17, %s29
    %s31 = ssub.s32 %s18, %s25
    %s32 = sor.u32 %s30, %s31
    %p33 = scmp.eq.s32.totalorder %s32, 0
    %s35 = sadd.s32 %s34, 1
    %s36 = scalar_select %p33, %s34, %s35
    %p39 = pneg %p33
    %p40 = scmp.eq.s32.totalorder %s10, 1
    %p41 = por %p39, %p40
    %p42 = scmp.ne.s32.totalorder %s34, %s37
    %p43 = scmp.eq.s32.totalorder %s10, 0
    %p44 = por %p42, %p43
    %p45 = scmp.ne.s32.totalorder %s34, %s37
    %p46 = scmp.eq.s32.totalorder %s15, 1
    %p47 = por %p45, %p46
    %p48 = scmp.ne.s32.totalorder %s37, %s38
    %p49 = scmp.eq.s32.totalorder %s15, 0
    %p50 = por %p48, %p49
    %p51 = scmp.ne.s32.totalorder %s37, %s38
    %p52 = scmp.eq.s32.totalorder %s16, 1
    %p53 = por %p51, %p52
    %p55 = scmp.ne.s32.totalorder %s38, %s54
    %p56 = scmp.eq.s32.totalorder %s16, 0
    %p57 = por %p55, %p56
    %s59 = sadd.s32 %s58, 1
    %p62 = scmp.eq.s32.totalorder %s10, 1
    %p63 = scmp.ne.s32.totalorder %s58, %s60
    %p64 = scmp.eq.s32.totalorder %s10, 0
    %p65 = por %p63, %p64
    %p66 = scmp.ne.s32.totalorder %s58, %s60
    %p67 = scmp.eq.s32.totalorder %s15, 1
    %p68 = por %p66, %p67
    %p69 = scmp.ne.s32.totalorder %s60, %s61
    %p70 = scmp.eq.s32.totalorder %s15, 0
    %p71 = por %p69, %p70
    %p72 = scmp.ne.s32.totalorder %s60, %s61
    %p73 = scmp.eq.s32.totalorder %s16, 1
    %p74 = por %p72, %p73
    %p76 = scmp.ne.s32.totalorder %s61, %s75
    %p77 = scmp.eq.s32.totalorder %s16, 0
    %p78 = por %p76, %p77
    %s80 = sadd.s32 %s79, 1
    %p83 = scmp.eq.s32.totalorder %s10, 1
    %p84 = scmp.ne.s32.totalorder %s79, %s81
    %p85 = scmp.eq.s32.totalorder %s10, 0
    %p86 = por %p84, %p85
    %p87 = scmp.ne.s32.totalorder %s79, %s81
    %p88 = scmp.eq.s32.totalorder %s15, 1
    %p89 = por %p87, %p88
    %p90 = scmp.ne.s32.totalorder %s81, %s82
    %p91 = scmp.eq.s32.totalorder %s15, 0
    %p92 = por %p90, %p91
    %p93 = scmp.ne.s32.totalorder %s81, %s82
    %p94 = scmp.eq.s32.totalorder %s16, 1
    %p95 = por %p93, %p94
    %p97 = scmp.ne.s32.totalorder %s82, %s96
    %p98 = scmp.eq.s32.totalorder %s16, 0
    %p99 = por %p97, %p98
    %s101 = sadd.s32 %s100, 1
    %p104 = scmp.eq.s32.totalorder %s10, 1
    %p105 = scmp.ne.s32.totalorder %s100, %s102
    %p106 = scmp.eq.s32.totalorder %s10, 0
    %p107 = por %p105, %p106
    %p108 = scmp.ne.s32.totalorder %s100, %s102
    %p109 = scmp.eq.s32.totalorder %s15, 1
    %p110 = por %p108, %p109
    %p111 = scmp.ne.s32.totalorder %s102, %s103
    %p112 = scmp.eq.s32.totalorder %s15, 0
    %p113 = por %p111, %p112
    %p114 = scmp.ne.s32.totalorder %s102, %s103
    %p115 = scmp.eq.s32.totalorder %s16, 1
    %p116 = por %p114, %p115
    %p118 = scmp.ne.s32.totalorder %s103, %s117
    %p119 = scmp.eq.s32.totalorder %s16, 0
    %p120 = por %p118, %p119
    %s121 = ssub.s32 %s17, %s29
    %s122 = ssub.s32 %s18, %s25
    %s123 = sor.u32 %s121, %s122
    %p124 = scmp.eq.s32.totalorder %s123, 0
    %s126 = sadd.s32 %s125, 1
    %s127 = scalar_select %p124, %s125, %s126
    %p130 = pneg %p124
    %p131 = scmp.eq.s32.totalorder %s10, 1
    %p132 = por %p130, %p131
    %p133 = scmp.ne.s32.totalorder %s125, %s128
    %p134 = scmp.eq.s32.totalorder %s10, 0
    %p135 = por %p133, %p134
    %p136 = scmp.ne.s32.totalorder %s125, %s128
    %p137 = scmp.eq.s32.totalorder %s15, 1
    %p138 = por %p136, %p137
    %p139 = scmp.ne.s32.totalorder %s128, %s129
    %p140 = scmp.eq.s32.totalorder %s15, 0
    %p141 = por %p139, %p140
    %p142 = scmp.ne.s32.totalorder %s128, %s129
    %p143 = scmp.eq.s32.totalorder %s16, 1
    %p144 = por %p142, %p143
    %p146 = scmp.ne.s32.totalorder %s129, %s145
    %p147 = scmp.eq.s32.totalorder %s16, 0
    %p148 = por %p146, %p147
    %p149 = scmp.le.s32.totalorder 1, %s10
    %p150 = scmp.lt.s32.totalorder %s10, 3
    %p151 = pnand %p149, %p150
    %p152 = pneg %p151
    // Predicated region
    $region9: #{deepset_layer_conv.1} parent=5 // pred_check
      _
    $region10: #{deepset_layer_conv.1} parent=5 // pred_check_branch
      %154 = sbr.rel (%p151) target = $region12
    $region11: #{deepset_layer_conv.1} parent=5 // pred_region
      %s155 = ssub.s32 %s10, 1
      // Predicated region
      $region13: #{deepset_layer_conv.1} parent=11 // pred_check
        %p156 = pneg %p71
      $region14: #{deepset_layer_conv.1} parent=11 // pred_check_branch
        %158 = sbr.rel (%p156) target = $region16
      $region15: #{deepset_layer_conv.1} parent=11 // pred_region
        _
      $region16: #{deepset_layer_conv.1} parent=11 // pred_fallthru
        _
      // Predicated region
      $region17: #{deepset_layer_conv.1} parent=11 // pred_check
        %p159 = pneg %p92
      $region18: #{deepset_layer_conv.1} parent=11 // pred_check_branch
        %161 = sbr.rel (%p159) target = $region20
      $region19: #{deepset_layer_conv.1} parent=11 // pred_region
        _
      $region20: #{deepset_layer_conv.1} parent=11 // pred_fallthru
        _
      // Predicated region
      $region21: #{deepset_layer_conv.1} parent=11 // pred_check
        %p162 = pneg %p113
      $region22: #{deepset_layer_conv.1} parent=11 // pred_check_branch
        %164 = sbr.rel (%p162) target = $region24
      $region23: #{deepset_layer_conv.1} parent=11 // pred_region
        _
      $region24: #{deepset_layer_conv.1} parent=11 // pred_fallthru
        _
    $region12: #{deepset_layer_conv.1} parent=5 // pred_fallthru
      _
    %p165 = scmp.lt.s32.totalorder %s10, 2
    // Predicated region
    $region25: #{deepset_layer_conv.1} parent=5 // pred_check
      %p166 = pneg %p165
    $region26: #{deepset_layer_conv.1} parent=5 // pred_check_branch
      %168 = sbr.rel (%p166) target = $region28
    $region27: #{deepset_layer_conv.1} parent=5 // pred_region
      // Predicated region
      $region29: #{deepset_layer_conv.1} parent=27 // pred_check
        %p169 = pneg %p44
      $region30: #{deepset_layer_conv.1} parent=27 // pred_check_branch
        %171 = sbr.rel (%p169) target = $region32
      $region31: #{deepset_layer_conv.1} parent=27 // pred_region
        %s172 = smul.u32 2, %s18
        %p173 = scmp.lt.s32.totalorder %s17, 1
        %s174 = scalar_select %p173, %s17, 1
        %p175 = scmp.lt.s32.totalorder %s172, 1
        %s176 = scalar_select %p175, %s172, 1
        %s177 = smul.addr %s174, 8
        %s178 = sadd.s32 %s176, %s177
        %s179 = smul.addr %s178, 8
        %s180 = scalar_lea.vmem %s0, %s179
        %s181 = smul.u32 2, %s18
      $region32: #{deepset_layer_conv.1} parent=27 // pred_fallthru
        _
    $region28: #{deepset_layer_conv.1} parent=5 // pred_fallthru
      _
    %p182 = scmp.le.s32.totalorder 1, %s10
    %p183 = scmp.lt.s32.totalorder %s10, 3
    %p184 = pnand %p182, %p183
    %p185 = pneg %p184
    // Predicated region
    $region33: #{deepset_layer_conv.1} parent=5 // pred_check
      _
    $region34: #{deepset_layer_conv.1} parent=5 // pred_check_branch
      %187 = sbr.rel (%p184) target = $region36
    $region35: #{deepset_layer_conv.1} parent=5 // pred_region
      %s188 = ssub.s32 %s10, 1
      %s189 = smul.u32 2, %s20
      %p190 = scmp.lt.s32.totalorder %s19, 1
      %s191 = scalar_select %p190, %s19, 1
      %p192 = scmp.lt.s32.totalorder %s189, 1
      %s193 = scalar_select %p192, %s189, 1
      %s194 = smul.addr %s191, 8
      %s195 = sadd.s32 %s193, %s194
      %s196 = smul.addr %s195, 8
      %s197 = scalar_lea.vmem %s0, %s196
      %p198 = pneg %p50
      %p199 = pneg %p47
      %p200 = pneg %p71
      %p201 = pneg %p68
      %p202 = pneg %p92
      %p203 = pneg %p89
      %p204 = pneg %p113
      %p205 = pneg %p110
      %p206 = pneg %p141
      %p207 = pneg %p138
      %s208 = smul.u32 2, %s20
      %p209 = scmp.lt.s32.totalorder %s19, 1
      %s210 = scalar_select %p209, %s19, 1
      %p211 = scmp.lt.s32.totalorder %s208, 1
      %s212 = scalar_select %p211, %s208, 1
      %s213 = smul.addr %s210, 8
      %s214 = sadd.s32 %s212, %s213
      %s215 = smul.addr %s214, 8
      %s216 = scalar_lea.vmem %s4, %s215
      %s217 = smul.u32 2, %s20
      %p218 = scmp.lt.s32.totalorder %s19, 1
      %s219 = scalar_select %p218, %s19, 1
      %p220 = scmp.lt.s32.totalorder %s217, 1
      %s221 = scalar_select %p220, %s217, 1
      %s222 = smul.addr %s219, 8
      %s223 = sadd.s32 %s221, %s222
      %s224 = smul.addr %s223, 8
      %s225 = scalar_lea.vmem %s0, %s224
      %s226 = smul.u32 2, %s20
      %s227 = smul.u32 2, %s20
      %p228 = scmp.lt.s32.totalorder %s19, 1
      %s229 = scalar_select %p228, %s19, 1
      %p230 = scmp.lt.s32.totalorder %s227, 1
      %s231 = scalar_select %p230, %s227, 1
      %s232 = smul.addr %s229, 8
      %s233 = sadd.s32 %s231, %s232
      %s234 = smul.addr %s233, 8
      %s235 = scalar_lea.vmem %s4, %s234
      %s236 = smul.u32 2, %s20
      %v237 = vld [vmem:[%s225] sm:$0xff]
      %v238 = vld [vmem:[%s225 + $0x8] sm:$0xff]
      %v239 = vld [vmem:[%s225 + $0x10] sm:$0xff]
      %v240 = vld [vmem:[%s225 + $0x18] sm:$0xff]
      %v241 = vld [vmem:[%s225 + $0x20] sm:$0xff]
      %v242 = vld [vmem:[%s225 + $0x28] sm:$0xff]
      %v243 = vld [vmem:[%s225 + $0x30] sm:$0xff]
      %v244 = vld [vmem:[%s225 + $0x38] sm:$0xff]
      %v245 = vadd.f32 %v237, %v239
      %v246 = vadd.f32 %v245, %v241
      %v247 = vadd.f32 %v246, %v243
      %v248 = vadd.f32 %v238, %v240
      %v249 = vadd.f32 %v248, %v242
      %v250 = vadd.f32 %v249, %v244
      %v251 = vld [vmem:[%s1] sm:$0xff]
      %vm252 = vcmask 64512
      %v254 = vsel %vm252, %v251, 0
      %256 = vmatprep.subr.mxu0 %v238
      %257 = vmatpush1.msra.mxu0 %v237
      %258 = vmatprep.subr.mxu0 0.0
      %259 = vmatpush1.msra.mxu0 0.0
      %260 = vmatprep.subr.mxu0 0.0
      %261 = vmatpush1.msra.mxu0 0.0
      %262 = vmatprep.subr.mxu0 0.0
      %263 = vmatpush1.msra.mxu0 0.0
      %264 = vmatprep.subr.mxu0 0.0
      %265 = vmatpush1.msra.mxu0 0.0
      %266 = vmatprep.subr.mxu0 0.0
      %267 = vmatpush1.msra.mxu0 0.0
      %268 = vmatprep.subr.mxu0 0.0
      %269 = vmatpush1.msra.mxu0 0.0
      %270 = vmatprep.subr.mxu0 0.0
      %271 = vmatpush1.msra.mxu0 0.0
      %272 = vmatprep.subr.mxu0 0.0
      %273 = vmatpush1.msra.mxu0 0.0
      %274 = vmatprep.subr.mxu0 0.0
      %275 = vmatpush1.msra.mxu0 0.0
      %276 = vmatprep.subr.mxu0 0.0
      %277 = vmatpush1.msra.mxu0 0.0
      %278 = vmatprep.subr.mxu0 0.0
      %279 = vmatpush1.msra.mxu0 0.0
      %280 = vmatprep.subr.mxu0 0.0
      %281 = vmatpush1.msra.mxu0 0.0
      %282 = vmatprep.subr.mxu0 0.0
      %283 = vmatpush1.msra.mxu0 0.0
      %284 = vmatprep.subr.mxu0 0.0
      %285 = vmatpush1.msra.mxu0 0.0
      %286 = vmatprep.subr.mxu0 0.0
      %287 = vmatpush1.msra.mxu0 0.0
      %288 = vmatprep.subr.mxu0 0.0
      %289 = vmatpush1.msra.mxu0 0.0
      %290 = vmatprep.subr.mxu0 0.0
      %291 = vmatpush1.msra.mxu0 0.0
      %292 = vmatprep.subr.mxu0 0.0
      %293 = vmatpush1.msra.mxu0 0.0
      %294 = vmatprep.subr.mxu0 0.0
      %295 = vmatpush1.msra.mxu0 0.0
      %296 = vmatprep.subr.mxu0 0.0
      %297 = vmatpush1.msra.mxu0 0.0
      %298 = vmatprep.subr.mxu0 0.0
      %299 = vmatpush1.msra.mxu0 0.0
      %300 = vmatprep.subr.mxu0 0.0
      %301 = vmatpush1.msra.mxu0 0.0
      %302 = vmatprep.subr.mxu0 0.0
      %303 = vmatpush1.msra.mxu0 0.0
      %304 = vmatprep.subr.mxu0 0.0
      %305 = vmatpush1.msra.mxu0 0.0
      %306 = vmatprep.subr.mxu0 0.0
      %307 = vmatpush1.msra.mxu0 0.0
      %308 = vmatprep.subr.mxu0 0.0
      %309 = vmatpush1.msra.mxu0 0.0
      %310 = vmatprep.subr.mxu0 0.0
      %311 = vmatpush1.msra.mxu0 0.0
      %312 = vmatprep.subr.mxu0 0.0
      %313 = vmatpush1.msra.mxu0 0.0
      %314 = vmatprep.subr.mxu0 0.0
      %315 = vmatpush1.msra.mxu0 0.0
      %316 = vmatprep.subr.mxu0 0.0
      %317 = vmatpush1.msra.mxu0 0.0
      %318 = vmatprep.subr.mxu0 0.0
      %319 = vmatpush1.msra.mxu0 0.0
      %320 = vmatprep.mubr.f32.mxu0 0.0
      %321 = vmatmul.mubr.f32.gmra.mrb[0].mxu0 %v254
      %v322 = vpop.f32.mrb[0].mxu0
      %v323 = vadd.f32 0.0, %v322
      %v324 = vpop.f32.mrb[0].mxu0
      %v325 = vadd.f32 0.0, %v324
      %326 = vdwg.mxu0
      %327 = vmatprep.subr.mxu0 %v240
      %328 = vmatpush1.msra.mxu0 %v239
      %329 = vmatprep.subr.mxu0 0.0
      %330 = vmatpush1.msra.mxu0 0.0
      %331 = vmatprep.subr.mxu0 0.0
      %332 = vmatpush1.msra.mxu0 0.0
      %333 = vmatprep.subr.mxu0 0.0
      %334 = vmatpush1.msra.mxu0 0.0
      %335 = vmatprep.subr.mxu0 0.0
      %336 = vmatpush1.msra.mxu0 0.0
      %337 = vmatprep.subr.mxu0 0.0
      %338 = vmatpush1.msra.mxu0 0.0
      %339 = vmatprep.subr.mxu0 0.0
      %340 = vmatpush1.msra.mxu0 0.0
      %341 = vmatprep.subr.mxu0 0.0
      %342 = vmatpush1.msra.mxu0 0.0
      %343 = vmatprep.subr.mxu0 0.0
      %344 = vmatpush1.msra.mxu0 0.0
      %345 = vmatprep.subr.mxu0 0.0
      %346 = vmatpush1.msra.mxu0 0.0
      %347 = vmatprep.subr.mxu0 0.0
      %348 = vmatpush1.msra.mxu0 0.0
      %349 = vmatprep.subr.mxu0 0.0
      %350 = vmatpush1.msra.mxu0 0.0
      %351 = vmatprep.subr.mxu0 0.0
      %352 = vmatpush1.msra.mxu0 0.0
      %353 = vmatprep.subr.mxu0 0.0
      %354 = vmatpush1.msra.mxu0 0.0
      %355 = vmatprep.subr.mxu0 0.0
      %356 = vmatpush1.msra.mxu0 0.0
      %357 = vmatprep.subr.mxu0 0.0
      %358 = vmatpush1.msra.mxu0 0.0
      %359 = vmatprep.subr.mxu0 0.0
      %360 = vmatpush1.msra.mxu0 0.0
      %361 = vmatprep.subr.mxu0 0.0
      %362 = vmatpush1.msra.mxu0 0.0
      %363 = vmatprep.subr.mxu0 0.0
      %364 = vmatpush1.msra.mxu0 0.0
      %365 = vmatprep.subr.mxu0 0.0
      %366 = vmatpush1.msra.mxu0 0.0
      %367 = vmatprep.subr.mxu0 0.0
      %368 = vmatpush1.msra.mxu0 0.0
      %369 = vmatprep.subr.mxu0 0.0
      %370 = vmatpush1.msra.mxu0 0.0
      %371 = vmatprep.subr.mxu0 0.0
      %372 = vmatpush1.msra.mxu0 0.0
      %373 = vmatprep.subr.mxu0 0.0
      %374 = vmatpush1.msra.mxu0 0.0
      %375 = vmatprep.subr.mxu0 0.0
      %376 = vmatpush1.msra.mxu0 0.0
      %377 = vmatprep.subr.mxu0 0.0
      %378 = vmatpush1.msra.mxu0 0.0
      %379 = vmatprep.subr.mxu0 0.0
      %380 = vmatpush1.msra.mxu0 0.0
      %381 = vmatprep.subr.mxu0 0.0
      %382 = vmatpush1.msra.mxu0 0.0
      %383 = vmatprep.subr.mxu0 0.0
      %384 = vmatpush1.msra.mxu0 0.0
      %385 = vmatprep.subr.mxu0 0.0
      %386 = vmatpush1.msra.mxu0 0.0
      %387 = vmatprep.subr.mxu0 0.0
      %388 = vmatpush1.msra.mxu0 0.0
      %389 = vmatprep.subr.mxu0 0.0
      %390 = vmatpush1.msra.mxu0 0.0
      %391 = vmatprep.mubr.f32.mxu0 0.0
      %392 = vmatmul.mubr.f32.gmra.mrb[0].mxu0 %v254
      %v393 = vpop.f32.mrb[0].mxu0
      %v394 = vadd.f32 0.0, %v393
      %v395 = vpop.f32.mrb[0].mxu0
      %v396 = vadd.f32 0.0, %v395
      %397 = vdwg.mxu0
      %398 = vmatprep.subr.mxu0 %v242
      %399 = vmatpush1.msra.mxu0 %v241
      %400 = vmatprep.subr.mxu0 0.0
      %401 = vmatpush1.msra.mxu0 0.0
      %402 = vmatprep.subr.mxu0 0.0
      %403 = vmatpush1.msra.mxu0 0.0
      %404 = vmatprep.subr.mxu0 0.0
      %405 = vmatpush1.msra.mxu0 0.0
      %406 = vmatprep.subr.mxu0 0.0
      %407 = vmatpush1.msra.mxu0 0.0
      %408 = vmatprep.subr.mxu0 0.0
      %409 = vmatpush1.msra.mxu0 0.0
      %410 = vmatprep.subr.mxu0 0.0
      %411 = vmatpush1.msra.mxu0 0.0
      %412 = vmatprep.subr.mxu0 0.0
      %413 = vmatpush1.msra.mxu0 0.0
      %414 = vmatprep.subr.mxu0 0.0
      %415 = vmatpush1.msra.mxu0 0.0
      %416 = vmatprep.subr.mxu0 0.0
      %417 = vmatpush1.msra.mxu0 0.0
      %418 = vmatprep.subr.mxu0 0.0
      %419 = vmatpush1.msra.mxu0 0.0
      %420 = vmatprep.subr.mxu0 0.0
      %421 = vmatpush1.msra.mxu0 0.0
      %422 = vmatprep.subr.mxu0 0.0
      %423 = vmatpush1.msra.mxu0 0.0
      %424 = vmatprep.subr.mxu0 0.0
      %425 = vmatpush1.msra.mxu0 0.0
      %426 = vmatprep.subr.mxu0 0.0
      %427 = vmatpush1.msra.mxu0 0.0
      %428 = vmatprep.subr.mxu0 0.0
      %429 = vmatpush1.msra.mxu0 0.0
      %430 = vmatprep.subr.mxu0 0.0
      %431 = vmatpush1.msra.mxu0 0.0
      %432 = vmatprep.subr.mxu0 0.0
      %433 = vmatpush1.msra.mxu0 0.0
      %434 = vmatprep.subr.mxu0 0.0
      %435 = vmatpush1.msra.mxu0 0.0
      %436 = vmatprep.subr.mxu0 0.0
      %437 = vmatpush1.msra.mxu0 0.0
      %438 = vmatprep.subr.mxu0 0.0
      %439 = vmatpush1.msra.mxu0 0.0
      %440 = vmatprep.subr.mxu0 0.0
      %441 = vmatpush1.msra.mxu0 0.0
      %442 = vmatprep.subr.mxu0 0.0
      %443 = vmatpush1.msra.mxu0 0.0
      %444 = vmatprep.subr.mxu0 0.0
      %445 = vmatpush1.msra.mxu0 0.0
      %446 = vmatprep.subr.mxu0 0.0
      %447 = vmatpush1.msra.mxu0 0.0
      %448 = vmatprep.subr.mxu0 0.0
      %449 = vmatpush1.msra.mxu0 0.0
      %450 = vmatprep.subr.mxu0 0.0
      %451 = vmatpush1.msra.mxu0 0.0
      %452 = vmatprep.subr.mxu0 0.0
      %453 = vmatpush1.msra.mxu0 0.0
      %454 = vmatprep.subr.mxu0 0.0
      %455 = vmatpush1.msra.mxu0 0.0
      %456 = vmatprep.subr.mxu0 0.0
      %457 = vmatpush1.msra.mxu0 0.0
      %458 = vmatprep.subr.mxu0 0.0
      %459 = vmatpush1.msra.mxu0 0.0
      %460 = vmatprep.subr.mxu0 0.0
      %461 = vmatpush1.msra.mxu0 0.0
      %462 = vmatprep.mubr.f32.mxu0 0.0
      %463 = vmatmul.mubr.f32.gmra.mrb[0].mxu0 %v254
      %v464 = vpop.f32.mrb[0].mxu0
      %v465 = vadd.f32 0.0, %v464
      %v466 = vpop.f32.mrb[0].mxu0
      %v467 = vadd.f32 0.0, %v466
      %468 = vdwg.mxu0
      %469 = vmatprep.subr.mxu0 %v244
      %470 = vmatpush1.msra.mxu0 %v243
      %471 = vmatprep.subr.mxu0 0.0
      %472 = vmatpush1.msra.mxu0 0.0
      %473 = vmatprep.subr.mxu0 0.0
      %474 = vmatpush1.msra.mxu0 0.0
      %475 = vmatprep.subr.mxu0 0.0
      %476 = vmatpush1.msra.mxu0 0.0
      %477 = vmatprep.subr.mxu0 0.0
      %478 = vmatpush1.msra.mxu0 0.0
      %479 = vmatprep.subr.mxu0 0.0
      %480 = vmatpush1.msra.mxu0 0.0
      %481 = vmatprep.subr.mxu0 0.0
      %482 = vmatpush1.msra.mxu0 0.0
      %483 = vmatprep.subr.mxu0 0.0
      %484 = vmatpush1.msra.mxu0 0.0
      %485 = vmatprep.subr.mxu0 0.0
      %486 = vmatpush1.msra.mxu0 0.0
      %487 = vmatprep.subr.mxu0 0.0
      %488 = vmatpush1.msra.mxu0 0.0
      %489 = vmatprep.subr.mxu0 0.0
      %490 = vmatpush1.msra.mxu0 0.0
      %491 = vmatprep.subr.mxu0 0.0
      %492 = vmatpush1.msra.mxu0 0.0
      %493 = vmatprep.subr.mxu0 0.0
      %494 = vmatpush1.msra.mxu0 0.0
      %495 = vmatprep.subr.mxu0 0.0
      %496 = vmatpush1.msra.mxu0 0.0
      %497 = vmatprep.subr.mxu0 0.0
      %498 = vmatpush1.msra.mxu0 0.0
      %499 = vmatprep.subr.mxu0 0.0
      %500 = vmatpush1.msra.mxu0 0.0
      %501 = vmatprep.subr.mxu0 0.0
      %502 = vmatpush1.msra.mxu0 0.0
      %503 = vmatprep.subr.mxu0 0.0
      %504 = vmatpush1.msra.mxu0 0.0
      %505 = vmatprep.subr.mxu0 0.0
      %506 = vmatpush1.msra.mxu0 0.0
      %507 = vmatprep.subr.mxu0 0.0
      %508 = vmatpush1.msra.mxu0 0.0
      %509 = vmatprep.subr.mxu0 0.0
      %510 = vmatpush1.msra.mxu0 0.0
      %511 = vmatprep.subr.mxu0 0.0
      %512 = vmatpush1.msra.mxu0 0.0
      %513 = vmatprep.subr.mxu0 0.0
      %514 = vmatpush1.msra.mxu0 0.0
      %515 = vmatprep.subr.mxu0 0.0
      %516 = vmatpush1.msra.mxu0 0.0
      %517 = vmatprep.subr.mxu0 0.0
      %518 = vmatpush1.msra.mxu0 0.0
      %519 = vmatprep.subr.mxu0 0.0
      %520 = vmatpush1.msra.mxu0 0.0
      %521 = vmatprep.subr.mxu0 0.0
      %522 = vmatpush1.msra.mxu0 0.0
      %523 = vmatprep.subr.mxu0 0.0
      %524 = vmatpush1.msra.mxu0 0.0
      %525 = vmatprep.subr.mxu0 0.0
      %526 = vmatpush1.msra.mxu0 0.0
      %527 = vmatprep.subr.mxu0 0.0
      %528 = vmatpush1.msra.mxu0 0.0
      %529 = vmatprep.subr.mxu0 0.0
      %530 = vmatpush1.msra.mxu0 0.0
      %531 = vmatprep.subr.mxu0 0.0
      %532 = vmatpush1.msra.mxu0 0.0
      %533 = vmatprep.mubr.f32.mxu0 0.0
      %534 = vmatmul.mubr.f32.gmra.mrb[0].mxu0 %v254
      %v535 = vpop.f32.mrb[0].mxu0
      %v536 = vadd.f32 0.0, %v535
      %v537 = vpop.f32.mrb[0].mxu0
      %v538 = vadd.f32 0.0, %v537
      %539 = vdwg.mxu0
      %v540 = vld [vmem:[%s2] sm:$0xff]
      %v542 = vsel %vm252, %v540, 0
      %544 = vmatprep.subr.mxu0 %v250
      %545 = vmatpush1.msra.mxu0 %v247
      %546 = vmatprep.subr.mxu0 0.0
      %547 = vmatpush1.msra.mxu0 0.0
      %548 = vmatprep.subr.mxu0 0.0
      %549 = vmatpush1.msra.mxu0 0.0
      %550 = vmatprep.subr.mxu0 0.0
      %551 = vmatpush1.msra.mxu0 0.0
      %552 = vmatprep.subr.mxu0 0.0
      %553 = vmatpush1.msra.mxu0 0.0
      %554 = vmatprep.subr.mxu0 0.0
      %555 = vmatpush1.msra.mxu0 0.0
      %556 = vmatprep.subr.mxu0 0.0
      %557 = vmatpush1.msra.mxu0 0.0
      %558 = vmatprep.subr.mxu0 0.0
      %559 = vmatpush1.msra.mxu0 0.0
      %560 = vmatprep.subr.mxu0 0.0
      %561 = vmatpush1.msra.mxu0 0.0
      %562 = vmatprep.subr.mxu0 0.0
      %563 = vmatpush1.msra.mxu0 0.0
      %564 = vmatprep.subr.mxu0 0.0
      %565 = vmatpush1.msra.mxu0 0.0
      %566 = vmatprep.subr.mxu0 0.0
      %567 = vmatpush1.msra.mxu0 0.0
      %568 = vmatprep.subr.mxu0 0.0
      %569 = vmatpush1.msra.mxu0 0.0
      %570 = vmatprep.subr.mxu0 0.0
      %571 = vmatpush1.msra.mxu0 0.0
      %572 = vmatprep.subr.mxu0 0.0
      %573 = vmatpush1.msra.mxu0 0.0
      %574 = vmatprep.subr.mxu0 0.0
      %575 = vmatpush1.msra.mxu0 0.0
      %576 = vmatprep.subr.mxu0 0.0
      %577 = vmatpush1.msra.mxu0 0.0
      %578 = vmatprep.subr.mxu0 0.0
      %579 = vmatpush1.msra.mxu0 0.0
      %580 = vmatprep.subr.mxu0 0.0
      %581 = vmatpush1.msra.mxu0 0.0
      %582 = vmatprep.subr.mxu0 0.0
      %583 = vmatpush1.msra.mxu0 0.0
      %584 = vmatprep.subr.mxu0 0.0
      %585 = vmatpush1.msra.mxu0 0.0
      %586 = vmatprep.subr.mxu0 0.0
      %587 = vmatpush1.msra.mxu0 0.0
      %588 = vmatprep.subr.mxu0 0.0
      %589 = vmatpush1.msra.mxu0 0.0
      %590 = vmatprep.subr.mxu0 0.0
      %591 = vmatpush1.msra.mxu0 0.0
      %592 = vmatprep.subr.mxu0 0.0
      %593 = vmatpush1.msra.mxu0 0.0
      %594 = vmatprep.subr.mxu0 0.0
      %595 = vmatpush1.msra.mxu0 0.0
      %596 = vmatprep.subr.mxu0 0.0
      %597 = vmatpush1.msra.mxu0 0.0
      %598 = vmatprep.subr.mxu0 0.0
      %599 = vmatpush1.msra.mxu0 0.0
      %600 = vmatprep.subr.mxu0 0.0
      %601 = vmatpush1.msra.mxu0 0.0
      %602 = vmatprep.subr.mxu0 0.0
      %603 = vmatpush1.msra.mxu0 0.0
      %604 = vmatprep.subr.mxu0 0.0
      %605 = vmatpush1.msra.mxu0 0.0
      %606 = vmatprep.subr.mxu0 0.0
      %607 = vmatpush1.msra.mxu0 0.0
      %608 = vmatprep.mubr.f32.mxu0 0.0
      %609 = vmatmul.mubr.f32.gmra.mrb[0].mxu0 %v542
      %v610 = vpop.f32.mrb[0].mxu0
      %v611 = vadd.f32 0.0, %v610
      %v612 = vpop.f32.mrb[0].mxu0
      %v613 = vadd.f32 0.0, %v612
      %614 = vdwg.mxu0
      %v615 = vadd.f32 %v323, %v611
      %v616 = vadd.f32 %v325, %v613
      %v617 = vadd.f32 %v394, %v611
      %v618 = vadd.f32 %v396, %v613
      %v619 = vadd.f32 %v465, %v611
      %v620 = vadd.f32 %v467, %v613
      %v621 = vadd.f32 %v536, %v611
      %v622 = vadd.f32 %v538, %v613
      %v623 = vld [vmem:[%s3] sm:$0xff]
      %625 = vset.pattern.permute.xlu0 0
      %626 = vperm.xlu0 %625, %v623
      %v627 = vpop.permute.xlu0 %626
      %v629 = vadd.f32 %v615, %v627
      %v630 = vadd.f32 %v616, %v627
      %v631 = vadd.f32 %v617, %v627
      %v632 = vadd.f32 %v618, %v627
      %v633 = vadd.f32 %v619, %v627
      %v634 = vadd.f32 %v620, %v627
      %v635 = vadd.f32 %v621, %v627
      %v636 = vadd.f32 %v622, %v627
      %637 = vst [vmem:[%s235] sm:$0xff] %v629
      %638 = vst [vmem:[%s235 + $0x8] sm:$0xff] %v630
      %639 = vst [vmem:[%s235 + $0x10] sm:$0xff] %v631
      %640 = vst [vmem:[%s235 + $0x18] sm:$0xff] %v632
      %641 = vst [vmem:[%s235 + $0x20] sm:$0xff] %v633
      %642 = vst [vmem:[%s235 + $0x28] sm:$0xff] %v634
      %643 = vst [vmem:[%s235 + $0x30] sm:$0xff] %v635
      %644 = vst [vmem:[%s235 + $0x38] sm:$0xff] %v636
      %s645 = smul.u32 2, %s20
      %p646 = scmp.lt.s32.totalorder %s19, 1
      %s647 = scalar_select %p646, %s19, 1
      %p648 = scmp.lt.s32.totalorder %s645, 1
      %s649 = scalar_select %p648, %s645, 1
      %s650 = smul.addr %s647, 8
      %s651 = sadd.s32 %s649, %s650
      %s652 = smul.addr %s651, 8
      %s653 = scalar_lea.vmem %s4, %s652
      // Predicated region
      $region37: #{deepset_layer_conv.1} parent=35 // pred_check
        %p654 = pneg %p138
      $region38: #{deepset_layer_conv.1} parent=35 // pred_check_branch
        %656 = sbr.rel (%p654) target = $region40
      $region39: #{deepset_layer_conv.1} parent=35 // pred_region
        %s657 = smul.u32 2, %s20
      $region40: #{deepset_layer_conv.1} parent=35 // pred_fallthru
        _
    $region36: #{deepset_layer_conv.1} parent=5 // pred_fallthru
      _
    %p658 = scmp.le.s32.totalorder 2, %s10
    // Predicated region
    $region41: #{deepset_layer_conv.1} parent=5 // pred_check
      %p659 = pneg %p658
    $region42: #{deepset_layer_conv.1} parent=5 // pred_check_branch
      %661 = sbr.rel (%p659) target = $region44
    $region43: #{deepset_layer_conv.1} parent=5 // pred_region
      %s662 = ssub.s32 %s10, 2
      // Predicated region
      $region45: #{deepset_layer_conv.1} parent=43 // pred_check
        %p663 = pneg %p144
      $region46: #{deepset_layer_conv.1} parent=43 // pred_check_branch
        %665 = sbr.rel (%p663) target = $region48
      $region47: #{deepset_layer_conv.1} parent=43 // pred_region
        %s666 = smul.u32 2, %s22
        %p667 = scmp.lt.s32.totalorder %s21, 1
        %s668 = scalar_select %p667, %s21, 1
        %p669 = scmp.lt.s32.totalorder %s666, 1
        %s670 = scalar_select %p669, %s666, 1
        %s671 = smul.addr %s668, 8
        %s672 = sadd.s32 %s670, %s671
        %s673 = smul.addr %s672, 8
        %s674 = scalar_lea.vmem %s4, %s673
      $region48: #{deepset_layer_conv.1} parent=43 // pred_fallthru
        _
    $region44: #{deepset_layer_conv.1} parent=5 // pred_fallthru
      _
  $region6: #{deepset_layer_conv.1} parent=0 // loop_footer
    %s14 = sadd.s32 1, %s10
  $region7: #{deepset_layer_conv.1} parent=0 // loop_footer_branch
    %9 = sbr.rel target = $region3
  $region8: #{deepset_layer_conv.1} parent=0 // loop_exit
    _

</llo_original>
